<compile_context>
chip_gen: v7x
topology: tpu7x:2x2x1
jax: 0.10.0
libtpu: 0.0.40
codegen_flags: <defaults>
</compile_context>

<pallas_src>
import functools

import jax
import jax.numpy as jnp
from jax import lax
from jax.experimental import pallas as pl
from jax.experimental.pallas import tpu as pltpu

_LANE = 128
_R_TILE_CAP = 1024                  # 1024 rows * 128 lanes * 3 ch * 4 B = 1.5 MiB / batch entry
_BLOCK_BYTES_CAP = 2 * 1024 * 1024  # f32-equivalent per-input block target (VMEM-safe on v7x)


def _cdiv(a, b):
    return -(-a // b)


def _loss_kernel(fake_ref, real_ref, out_ref, l1_acc, ang_acc, *,
                 hw, r_tile, r_per_split, inv_n_l1, inv_n_ang, need_mask):
    s = pl.program_id(0)    # row-split axis (parallel; shards across v7x TensorCores)
    ri = pl.program_id(2)   # row-tile index inside this split (reduction)

    @pl.when(ri == 0)
    def _():
        l1_acc[...] = jnp.zeros_like(l1_acc)
        ang_acc[...] = jnp.zeros_like(ang_acc)

    f = fake_ref[...].astype(jnp.float32)   # (b_tile, 3, r_tile, 128)
    g = real_ref[...].astype(jnp.float32)

    # ---- L1: channel+batch-summed |diff| -> one dense (r_tile, 128) slab ----
    l1_c = jnp.sum(jnp.abs(f - g), axis=(0, 1))

    # ---- angle: channel reductions are adds of 3 dense slabs (leading axis);
    #      denominator matches the PyTorch module exactly: sqrt(a2)*sqrt(b2) + 1e-12 ----
    ab = jnp.sum(f * g, axis=1)             # (b_tile, r_tile, 128)
    a2 = jnp.sum(f * f, axis=1)
    b2 = jnp.sum(g * g, axis=1)
    denom = jnp.sqrt(a2) * jnp.sqrt(b2) + 1e-12
    ang_c = jnp.sum(jnp.abs(ab / denom - 1.0), axis=0)   # (r_tile, 128)

    if need_mask:  # static: only emitted when the spatial axis is ragged / zero-padded
        row0 = (s * r_per_split + ri) * r_tile
        is_boundary = (row0 + r_tile) * _LANE > hw

        @pl.when(is_boundary)  # mask cost is paid only on the single boundary tile
        def _():
            rows = lax.broadcasted_iota(jnp.int32, (r_tile, _LANE), 0)
            lanes = lax.broadcasted_iota(jnp.int32, (r_tile, _LANE), 1)
            valid = (row0 + rows) * _LANE + lanes < hw
            l1_acc[...] += jnp.where(valid, l1_c, 0.0)
            ang_acc[...] += jnp.where(valid, ang_c, 0.0)

        @pl.when(jnp.logical_not(is_boundary))
        def _():
            l1_acc[...] += l1_c
            ang_acc[...] += ang_c
    else:
        l1_acc[...] += l1_c
        ang_acc[...] += ang_c

    # ---- epilogue: one cross-lane reduce + normalize, per (split, batch-tile) partial ----
    @pl.when(ri == pl.num_programs(2) - 1)
    def _():
        l1_sum = jnp.sum(l1_acc[...])
        ang_sum = jnp.sum(ang_acc[...])
        out_ref[...] = (l1_sum * inv_n_l1 + 0.1 * ang_sum * inv_n_ang).reshape(1, 1, 1, 1)


def loss_fcn(fake, real):
    """Equivalent of LossFcn().forward(fake, real) for NCHW inputs with C == 3.

    Inputs may be float32 or bfloat16; accumulation is done in float32.
    """
    B, C, H, W = fake.shape
    assert C == 3, "AngleLossFcn assumes 3 channels"
    assert real.shape == fake.shape
    hw = H * W
    R = _cdiv(hw, _LANE)
    hw_pad = R * _LANE

    fake2 = fake.reshape(B, C, hw)
    real2 = real.reshape(B, C, hw)
    if hw_pad != hw:
        # Minimal pad (< 128 elements) so the spatial axis can be viewed as (rows, 128);
        # padded lanes are zero (L1-neutral) and masked in-kernel for the angle term.
        pad = ((0, 0), (0, 0), (0, hw_pad - hw))
        fake2 = jnp.pad(fake2, pad)
        real2 = jnp.pad(real2, pad)
    fake4 = fake2.reshape(B, C, R, _LANE)
    real4 = real2.reshape(B, C, R, _LANE)

    # --- block selection: lane-dense (rows, 128) slabs, ~1.5-2 MiB per input block ---
    r_tile = R if R <= _R_TILE_CAP else _R_TILE_CAP       # = R (full dim) or multiple of 8
    n_r = _cdiv(R, r_tile)

    bytes_per_b = C * r_tile * _LANE * 4                  # f32-equivalent (compute dtype)
    max_b = max(1, _BLOCK_BYTES_CAP // bytes_per_b)
    b_tile = 1
    for d in range(min(B, max_b), 0, -1):                 # largest divisor of B that fits
        if B % d == 0:
            b_tile = d
            break
    n_b = B // b_tile

    # 2-way "parallel" split of the row loop only when batch provides no parallel axis
    # and the split is clean (block size unchanged -> single-TC chips pay ~nothing).
    n_splits = 2 if (n_b == 1 and n_r >= 2 and n_r % 2 == 0) else 1
    r_per_split = n_r // n_splits

    need_mask = (hw_pad != hw) or (n_r * r_tile != R)

    n_l1 = float(B * C * hw)    # L1Loss: mean over every element
    n_ang = float(B * hw)       # AngleLossFcn: mean over (B, H, W)

    kernel = functools.partial(
        _loss_kernel, hw=hw, r_tile=r_tile, r_per_split=r_per_split,
        inv_n_l1=1.0 / n_l1, inv_n_ang=1.0 / n_ang, need_mask=need_mask)

    in_map = lambda s, b, r: (b, 0, s * r_per_split + r, 0)

    partials = pl.pallas_call(
        kernel,
        out_shape=jax.ShapeDtypeStruct((n_splits, n_b, 1, 1), jnp.float32),
        grid_spec=pltpu.PrefetchScalarGridSpec(
            num_scalar_prefetch=0,
            grid=(n_splits, n_b, r_per_split),
            in_specs=[
                pl.BlockSpec((b_tile, C, r_tile, _LANE), in_map),
                pl.BlockSpec((b_tile, C, r_tile, _LANE), in_map),
            ],
            out_specs=pl.BlockSpec((1, 1, 1, 1), lambda s, b, r: (s, b, 0, 0)),
            scratch_shapes=[
                pltpu.VMEM((r_tile, _LANE), jnp.float32),   # L1 accumulator (channel+batch summed)
                pltpu.VMEM((r_tile, _LANE), jnp.float32),   # angle accumulator
            ],
        ),
        compiler_params=pltpu.CompilerParams(
            dimension_semantics=("parallel", "parallel", "arbitrary"),
        ),
    )(fake4, real4)

    # combine per-(split, batch-tile) partials (each already normalized and weighted)
    return jnp.sum(partials)


def _loss_ref(fake, real):
    """Pure-JAX reference mirroring the PyTorch module."""
    l1 = jnp.mean(jnp.abs(fake - real))
    ab = jnp.sum(fake * real, axis=1)
    a = jnp.sqrt(jnp.sum(fake * fake, axis=1))
    b = jnp.sqrt(jnp.sum(real * real, axis=1))
    angle = jnp.mean(jnp.abs(ab / (a * b + 1e-12) - 1.0))
    return l1 + 0.1 * angle


if __name__ == "__main__":
    key = jax.random.PRNGKey(0)
    k1, k2 = jax.random.split(key)
    B, C, H, W = 2, 3, 16, 16
    fake = jax.random.normal(k1, (B, C, H, W), dtype=jnp.float32)
    real = jax.random.normal(k2, (B, C, H, W), dtype=jnp.float32)

    loss = jax.block_until_ready(loss_fcn(fake, real))
    ref = _loss_ref(fake, real)

    assert jnp.allclose(loss, ref, rtol=1e-5, atol=1e-5), (loss, ref)
    print("KERNEL_OK")
</pallas_src>

<mosaic_0001>
module attributes {stable_mosaic.version = 11 : i64} {
  func.func @_loss_kernel(%arg0: i32, %arg1: i32, %arg2: i32, %arg3: memref<2x3x2x128xf32, #tpu.memory_space<vmem>>, %arg4: memref<2x3x2x128xf32, #tpu.memory_space<vmem>>, %arg5: memref<1x1x1x1xf32, #tpu.memory_space<vmem>>, %arg6: memref<2x128xf32, #tpu.memory_space<vmem>>, %arg7: memref<2x128xf32, #tpu.memory_space<vmem>>) attributes {dimension_semantics = [#tpu.dimension_semantics<parallel>, #tpu.dimension_semantics<parallel>, #tpu.dimension_semantics<arbitrary>], iteration_bounds = array<i64: 1, 1, 1>, scalar_prefetch = 0 : i64, scratch_operands = 2 : i64, tpu.core_type = #tpu.core_type<tc>, window_params = [{transform_indices = @transform_0, window_bounds = array<i64: 2, 3, 2, 128>}, {transform_indices = @transform_1, window_bounds = array<i64: 2, 3, 2, 128>}, {transform_indices = @transform_2, window_bounds = array<i64: 1, 1, 1, 1>}]} {
    %c0_i32 = arith.constant 0 : i32
    %0 = arith.cmpi eq, %arg2, %c0_i32 : i32
    %1 = arith.extui %0 : i1 to i32
    %c0_i32_0 = arith.constant 0 : i32
    %2 = arith.cmpi ne, %1, %c0_i32_0 : i32
    scf.if %2 {
      %cst_24 = arith.constant 0.000000e+00 : f32
      %33 = vector.broadcast %cst_24 : f32 to vector<2x128xf32>
      %c0_25 = arith.constant 0 : index
      %c0_26 = arith.constant 0 : index
      %34 = vector.load %arg6[%c0_25, %c0_26] : memref<2x128xf32, #tpu.memory_space<vmem>>, vector<2x128xf32>
      tpu.vector_store %arg6[%c0_25, %c0_26], %33 {strides = array<i32>} : memref<2x128xf32, #tpu.memory_space<vmem>>, vector<2x128xf32>,
      %cst_27 = arith.constant 0.000000e+00 : f32
      %35 = vector.broadcast %cst_27 : f32 to vector<2x128xf32>
      %c0_28 = arith.constant 0 : index
      %c0_29 = arith.constant 0 : index
      %36 = vector.load %arg7[%c0_28, %c0_29] : memref<2x128xf32, #tpu.memory_space<vmem>>, vector<2x128xf32>
      tpu.vector_store %arg7[%c0_28, %c0_29], %35 {strides = array<i32>} : memref<2x128xf32, #tpu.memory_space<vmem>>, vector<2x128xf32>,
    } else {
    }
    %c0 = arith.constant 0 : index
    %c0_1 = arith.constant 0 : index
    %c0_2 = arith.constant 0 : index
    %c0_3 = arith.constant 0 : index
    %3 = vector.load %arg3[%c0, %c0_1, %c0_2, %c0_3] : memref<2x3x2x128xf32, #tpu.memory_space<vmem>>, vector<2x3x2x128xf32>
    %c0_4 = arith.constant 0 : index
    %c0_5 = arith.constant 0 : index
    %c0_6 = arith.constant 0 : index
    %c0_7 = arith.constant 0 : index
    %4 = vector.load %arg4[%c0_4, %c0_5, %c0_6, %c0_7] : memref<2x3x2x128xf32, #tpu.memory_space<vmem>>, vector<2x3x2x128xf32>
    %5 = arith.subf %3, %4 : vector<2x3x2x128xf32>
    %6 = math.absf %5 : vector<2x3x2x128xf32>
    %cst = arith.constant dense<0.000000e+00> : vector<2x128xf32>
    %7 = vector.multi_reduction <add>, %6, %cst [0, 1] : vector<2x3x2x128xf32> to vector<2x128xf32>
    %8 = arith.mulf %3, %4 : vector<2x3x2x128xf32>
    %cst_8 = arith.constant dense<0.000000e+00> : vector<2x2x128xf32>
    %9 = vector.multi_reduction <add>, %8, %cst_8 [1] : vector<2x3x2x128xf32> to vector<2x2x128xf32>
    %10 = arith.mulf %3, %3 : vector<2x3x2x128xf32>
    %cst_9 = arith.constant dense<0.000000e+00> : vector<2x2x128xf32>
    %11 = vector.multi_reduction <add>, %10, %cst_9 [1] : vector<2x3x2x128xf32> to vector<2x2x128xf32>
    %12 = arith.mulf %4, %4 : vector<2x3x2x128xf32>
    %cst_10 = arith.constant dense<0.000000e+00> : vector<2x2x128xf32>
    %13 = vector.multi_reduction <add>, %12, %cst_10 [1] : vector<2x3x2x128xf32> to vector<2x2x128xf32>
    %14 = math.sqrt %11 : vector<2x2x128xf32>
    %15 = math.sqrt %13 : vector<2x2x128xf32>
    %16 = arith.mulf %14, %15 : vector<2x2x128xf32>
    %cst_11 = arith.constant 9.99999996E-13 : f32
    %17 = vector.broadcast %cst_11 : f32 to vector<2x2x128xf32>
    %18 = arith.addf %16, %17 : vector<2x2x128xf32>
    %19 = arith.divf %9, %18 : vector<2x2x128xf32>
    %cst_12 = arith.constant 1.000000e+00 : f32
    %20 = vector.broadcast %cst_12 : f32 to vector<2x2x128xf32>
    %21 = arith.subf %19, %20 : vector<2x2x128xf32>
    %22 = math.absf %21 : vector<2x2x128xf32>
    %cst_13 = arith.constant dense<0.000000e+00> : vector<2x128xf32>
    %23 = vector.multi_reduction <add>, %22, %cst_13 [0] : vector<2x2x128xf32> to vector<2x128xf32>
    %c0_14 = arith.constant 0 : index
    %c0_15 = arith.constant 0 : index
    %24 = vector.load %arg6[%c0_14, %c0_15] : memref<2x128xf32, #tpu.memory_space<vmem>>, vector<2x128xf32>
    %25 = arith.addf %24, %7 : vector<2x128xf32>
    %c0_16 = arith.constant 0 : index
    %c0_17 = arith.constant 0 : index
    %26 = vector.load %arg6[%c0_16, %c0_17] : memref<2x128xf32, #tpu.memory_space<vmem>>, vector<2x128xf32>
    tpu.vector_store %arg6[%c0_16, %c0_17], %25 {strides = array<i32>} : memref<2x128xf32, #tpu.memory_space<vmem>>, vector<2x128xf32>,
    %c0_18 = arith.constant 0 : index
    %c0_19 = arith.constant 0 : index
    %27 = vector.load %arg7[%c0_18, %c0_19] : memref<2x128xf32, #tpu.memory_space<vmem>>, vector<2x128xf32>
    %28 = arith.addf %27, %23 : vector<2x128xf32>
    %c0_20 = arith.constant 0 : index
    %c0_21 = arith.constant 0 : index
    %29 = vector.load %arg7[%c0_20, %c0_21] : memref<2x128xf32, #tpu.memory_space<vmem>>, vector<2x128xf32>
    tpu.vector_store %arg7[%c0_20, %c0_21], %28 {strides = array<i32>} : memref<2x128xf32, #tpu.memory_space<vmem>>, vector<2x128xf32>,
    %c0_i32_22 = arith.constant 0 : i32
    %30 = arith.cmpi eq, %arg2, %c0_i32_22 : i32
    %31 = arith.extui %30 : i1 to i32
    %c0_i32_23 = arith.constant 0 : i32
    %32 = arith.cmpi ne, %31, %c0_i32_23 : i32
    scf.if %32 {
      %c0_24 = arith.constant 0 : index
      %c0_25 = arith.constant 0 : index
      %33 = vector.load %arg6[%c0_24, %c0_25] : memref<2x128xf32, #tpu.memory_space<vmem>>, vector<2x128xf32>
      %34 = vector.shape_cast %33 : vector<2x128xf32> to vector<1x2x128xf32>
      %cst_26 = arith.constant dense<0.000000e+00> : vector<1xf32>
      %35 = vector.multi_reduction <add>, %34, %cst_26 [1, 2] : vector<1x2x128xf32> to vector<1xf32>
      %36 = vector.shape_cast %35 : vector<1xf32> to vector<1x1x1xf32>
      %37 = vector.extract %36[0, 0, 0] : f32 from vector<1x1x1xf32>
      %c0_27 = arith.constant 0 : index
      %c0_28 = arith.constant 0 : index
      %38 = vector.load %arg7[%c0_27, %c0_28] : memref<2x128xf32, #tpu.memory_space<vmem>>, vector<2x128xf32>
      %39 = vector.shape_cast %38 : vector<2x128xf32> to vector<1x2x128xf32>
      %cst_29 = arith.constant dense<0.000000e+00> : vector<1xf32>
      %40 = vector.multi_reduction <add>, %39, %cst_29 [1, 2] : vector<1x2x128xf32> to vector<1xf32>
      %41 = vector.shape_cast %40 : vector<1xf32> to vector<1x1x1xf32>
      %42 = vector.extract %41[0, 0, 0] : f32 from vector<1x1x1xf32>
      %cst_30 = arith.constant 6.51041686E-4 : f32
      %43 = arith.mulf %37, %cst_30 : f32
      %cst_31 = arith.constant 1.000000e-01 : f32
      %44 = arith.mulf %cst_31, %42 : f32
      %cst_32 = arith.constant 0.001953125 : f32
      %45 = arith.mulf %44, %cst_32 : f32
      %46 = arith.addf %43, %45 : f32
      %47 = vector.broadcast %46 : f32 to vector<1x1x1x1xf32>
      %c0_33 = arith.constant 0 : index
      %c0_34 = arith.constant 0 : index
      %c0_35 = arith.constant 0 : index
      %c0_36 = arith.constant 0 : index
      %48 = vector.load %arg5[%c0_33, %c0_34, %c0_35, %c0_36] : memref<1x1x1x1xf32, #tpu.memory_space<vmem>>, vector<1x1x1x1xf32>
      tpu.vector_store %arg5[%c0_33, %c0_34, %c0_35, %c0_36], %47 {strides = array<i32>} : memref<1x1x1x1xf32, #tpu.memory_space<vmem>>, vector<1x1x1x1xf32>,
    } else {
    }
    return
  }
  func.func @transform_0(%arg0: i32, %arg1: i32, %arg2: i32) -> (i32, i32, i32, i32) {
    %c1_i32 = arith.constant 1 : i32
    %0 = arith.muli %arg0, %c1_i32 : i32
    %1 = arith.addi %0, %arg2 : i32
    %c0_i32 = arith.constant 0 : i32
    %c0_i32_0 = arith.constant 0 : i32
    %c0_i32_1 = arith.constant 0 : i32
    return %arg1, %c0_i32, %1, %c0_i32_0 : i32, i32, i32, i32
  }
  func.func @transform_1(%arg0: i32, %arg1: i32, %arg2: i32) -> (i32, i32, i32, i32) {
    %c1_i32 = arith.constant 1 : i32
    %0 = arith.muli %arg0, %c1_i32 : i32
    %1 = arith.addi %0, %arg2 : i32
    %c0_i32 = arith.constant 0 : i32
    %c0_i32_0 = arith.constant 0 : i32
    %c0_i32_1 = arith.constant 0 : i32
    return %arg1, %c0_i32, %1, %c0_i32_0 : i32, i32, i32, i32
  }
  func.func @transform_2(%arg0: i32, %arg1: i32, %arg2: i32) -> (i32, i32, i32, i32) {
    %c0_i32 = arith.constant 0 : i32
    %c0_i32_0 = arith.constant 0 : i32
    %c0_i32_1 = arith.constant 0 : i32
    return %arg0, %arg1, %c0_i32, %c0_i32_0 : i32, i32, i32, i32
  }
}

</mosaic_0001>

<llo_original>
// kernel: tpu_custom_call.1
$region0: #{tpu_custom_call.1}
  #allocation0 [shape = 'u32[]', space=smem, size = 0x4, offset = 0x4, fixed_abs, tag = 'smem constant byte address 0x4 - core index']
  #allocation1 [shape = 'u32[144,128]{1,0:T(1,128)}', space=vmem, size = 0x12000, scoped, tag = 'internal scratch']
  #allocation2 [shape = 'f32[2,128]{1,0:T(2,128)}', space=vmem, size = 0x400, scoped, tag = 'scratch operand']
  #allocation3 [shape = 'f32[2,128]{1,0:T(2,128)}', space=vmem, size = 0x400, scoped, tag = 'scratch operand']
  %s0 = inlined_call_operand.hbm [shape: f32[2,3,2,128], index: 0, kind: input, shape index: {}]
  %s1 = inlined_call_operand.hbm [shape: f32[2,3,2,128], index: 1, kind: input, shape index: {}]
  %s2 = inlined_call_operand.hbm [shape: f32[1,1,1,1], index: 2, kind: output, shape index: {}]
  %s3 = sld [smem:[#allocation0]]
  $region34: #{tpu_custom_call.1} parent=0
    _
  %s5 = ssub.s32 1, %s3
  %s6 = scalar_select 0, %s5, %s3
  $region1: #{tpu_custom_call.1} parent=0
    #allocation4 [shape = 'u8[6144]{0}', space=vmem, size = 0x1800, scoped, tag = 'input window, operand 0, single buffered']
    #allocation5 [shape = 's32[1]{0}', space=sflag, size = 0x4, scoped, tag = 'scoped memory for tpu_custom_call.1']
    #allocation6 [shape = 's32[1]{0}', space=sflag, size = 0x4, scoped, tag = 'scoped memory for tpu_custom_call.1']
    #allocation7 [shape = 'u8[6144]{0}', space=vmem, size = 0x1800, scoped, tag = 'input window, operand 1, single buffered']
    #allocation8 [shape = 's32[1]{0}', space=sflag, size = 0x4, scoped, tag = 'scoped memory for tpu_custom_call.1']
    #allocation9 [shape = 'u8[512]{0}', space=vmem, size = 0x400, scoped, tag = 'output window, operand 0, single buffered']
    %7 = vsyncpa [#allocation5], 0
    %8 = vsyncpa [#allocation8], 0
    %9 = vsyncpa [#allocation6], 0
    // Predicated region
    $region2: #{tpu_custom_call.1} parent=1 // pred_check
      _
    $region3: #{tpu_custom_call.1} parent=1 // pred_check_branch
      %11 = sbr.rel (0) target = $region5
    $region4: #{tpu_custom_call.1} parent=1 // pred_region
      %s12 = sadd.s32 0, 0
      %s14 = ssub.s32 192, 192
      %15 = vsyncadd [#allocation5], %s14
      %s16 = smul.addr %s12, 32
      %s17 = scalar_lea.hbm %s0, %s16
      %s18 = sshll.u32 [#allocation4], 4
      %s19 = int_to_ptr.vmem [resolvable:$true] %s18
      %24 = dma.hbm_to_vmem [thread:$0]  %s17, 192, %s19, [#allocation5], 32, 32, 2
    $region5: #{tpu_custom_call.1} parent=1 // pred_fallthru
      _
    // Predicated region
    $region6: #{tpu_custom_call.1} parent=1 // pred_check
      _
    $region7: #{tpu_custom_call.1} parent=1 // pred_check_branch
      %26 = sbr.rel (0) target = $region9
    $region8: #{tpu_custom_call.1} parent=1 // pred_region
      %s27 = sadd.s32 0, 0
      %s29 = ssub.s32 192, 192
      %30 = vsyncadd [#allocation8], %s29
      %s31 = smul.addr %s27, 32
      %s32 = scalar_lea.hbm %s1, %s31
      %s33 = sshll.u32 [#allocation7], 4
      %s34 = int_to_ptr.vmem [resolvable:$true] %s33
      %39 = dma.hbm_to_vmem [thread:$0]  %s32, 192, %s34, [#allocation8], 32, 32, 2
    $region9: #{tpu_custom_call.1} parent=1 // pred_fallthru
      _
    // Predicated region
    $region10: #{tpu_custom_call.1} parent=1 // pred_check
      _
    $region11: #{tpu_custom_call.1} parent=1 // pred_check_branch
      %41 = sbr.rel (0) target = $region13
    $region12: #{tpu_custom_call.1} parent=1 // pred_region
      %42 = dma.done [#allocation5], 192
    $region13: #{tpu_custom_call.1} parent=1 // pred_fallthru
      _
    // Predicated region
    $region14: #{tpu_custom_call.1} parent=1 // pred_check
      _
    $region15: #{tpu_custom_call.1} parent=1 // pred_check_branch
      %44 = sbr.rel (0) target = $region17
    $region16: #{tpu_custom_call.1} parent=1 // pred_region
      %45 = dma.done [#allocation8], 192
    $region17: #{tpu_custom_call.1} parent=1 // pred_fallthru
      _
    %s46 = sadd.s32 0, 0
    %s47 = sadd.s32 0, 0
    %p48 = scmp.eq.s32.totalorder 0, 0
    // Predicated region
    $region18: #{tpu_custom_call.1} parent=1 // pred_check
      %p49 = pneg %p48
    $region19: #{tpu_custom_call.1} parent=1 // pred_check_branch
      %51 = sbr.rel (%p49) target = $region21
    $region20: #{tpu_custom_call.1} parent=1 // pred_region
      %52 = vst [vmem:[#allocation2] sm:$0x3] 0.0
      %53 = vst [vmem:[#allocation3] sm:$0x3] 0.0
    $region21: #{tpu_custom_call.1} parent=1 // pred_fallthru
      _
    %v54 = vld [vmem:[#allocation4] sm:$0x3]
    %v55 = vld [vmem:[#allocation4 + $0x2] sm:$0x3]
    %v56 = vld [vmem:[#allocation4 + $0x4] sm:$0x3]
    %v57 = vld [vmem:[#allocation4 + $0x6] sm:$0x3]
    %v58 = vld [vmem:[#allocation4 + $0x8] sm:$0x3]
    %v59 = vld [vmem:[#allocation4 + $0xa] sm:$0x3]
    %v60 = vld [vmem:[#allocation7] sm:$0x3]
    %v61 = vld [vmem:[#allocation7 + $0x2] sm:$0x3]
    %v62 = vld [vmem:[#allocation7 + $0x4] sm:$0x3]
    %v63 = vld [vmem:[#allocation7 + $0x6] sm:$0x3]
    %v64 = vld [vmem:[#allocation7 + $0x8] sm:$0x3]
    %v65 = vld [vmem:[#allocation7 + $0xa] sm:$0x3]
    %v66 = vsub.f32 %v54, %v60
    %v67 = vsub.f32 %v55, %v61
    %v68 = vsub.f32 %v56, %v62
    %v69 = vsub.f32 %v57, %v63
    %v70 = vsub.f32 %v58, %v64
    %v71 = vsub.f32 %v59, %v65
    %v72 = vand.u32 2147483647, %v66
    %v73 = vand.u32 2147483647, %v67
    %v74 = vand.u32 2147483647, %v68
    %v75 = vand.u32 2147483647, %v69
    %v76 = vand.u32 2147483647, %v70
    %v77 = vand.u32 2147483647, %v71
    %vm78 = vcmask 1041408
    %v79 = vsel %vm78, %v72, 0.0
    %v80 = vsel %vm78, %v73, 0.0
    %v81 = vadd.f32 %v79, %v80
    %v82 = vsel %vm78, %v74, 0.0
    %v83 = vadd.f32 %v81, %v82
    %v84 = vsel %vm78, %v75, 0.0
    %v85 = vadd.f32 %v83, %v84
    %v86 = vsel %vm78, %v76, 0.0
    %v87 = vadd.f32 %v85, %v86
    %v88 = vsel %vm78, %v77, 0.0
    %v89 = vadd.f32 %v87, %v88
    %v90 = vmul.f32 %v54, %v60
    %v91 = vmul.f32 %v55, %v61
    %v92 = vmul.f32 %v56, %v62
    %v93 = vmul.f32 %v57, %v63
    %v94 = vmul.f32 %v58, %v64
    %v95 = vmul.f32 %v59, %v65
    %v96 = vsel %vm78, %v90, 0.0
    %v97 = vsel %vm78, %v91, 0.0
    %v98 = vadd.f32 %v96, %v97
    %v99 = vsel %vm78, %v92, 0.0
    %v100 = vadd.f32 %v98, %v99
    %v101 = vsel %vm78, %v93, 0.0
    %v102 = vsel %vm78, %v94, 0.0
    %v103 = vadd.f32 %v101, %v102
    %v104 = vsel %vm78, %v95, 0.0
    %v105 = vadd.f32 %v103, %v104
    %v106 = vmul.f32 %v54, %v54
    %v107 = vmul.f32 %v55, %v55
    %v108 = vmul.f32 %v56, %v56
    %v109 = vmul.f32 %v57, %v57
    %v110 = vmul.f32 %v58, %v58
    %v111 = vmul.f32 %v59, %v59
    %v112 = vsel %vm78, %v106, 0.0
    %v113 = vsel %vm78, %v107, 0.0
    %v114 = vadd.f32 %v112, %v113
    %v115 = vsel %vm78, %v108, 0.0
    %v116 = vadd.f32 %v114, %v115
    %v117 = vsel %vm78, %v109, 0.0
    %v118 = vsel %vm78, %v110, 0.0
    %v119 = vadd.f32 %v117, %v118
    %v120 = vsel %vm78, %v111, 0.0
    %v121 = vadd.f32 %v119, %v120
    %v122 = vmul.f32 %v60, %v60
    %v123 = vmul.f32 %v61, %v61
    %v124 = vmul.f32 %v62, %v62
    %v125 = vmul.f32 %v63, %v63
    %v126 = vmul.f32 %v64, %v64
    %v127 = vmul.f32 %v65, %v65
    %v128 = vsel %vm78, %v122, 0.0
    %v129 = vsel %vm78, %v123, 0.0
    %v130 = vadd.f32 %v128, %v129
    %v131 = vsel %vm78, %v124, 0.0
    %v132 = vadd.f32 %v130, %v131
    %v133 = vsel %vm78, %v125, 0.0
    %v134 = vsel %vm78, %v126, 0.0
    %v135 = vadd.f32 %v133, %v134
    %v136 = vsel %vm78, %v127, 0.0
    %v137 = vadd.f32 %v135, %v136
    %v138 = vrsqrt.pop %v116
    %v139 = vmul.f32 %v116, %v138
    %vm140 = vcmp.eq.f32.partialorder %v116, inf
    %v141 = vsel %vm140, %v116, %v139
    %vm142 = vcmp.eq.f32.partialorder %v116, 0.0
    %v143 = vand.u32 %v116, 2147483648
    %v144 = vsel %vm142, %v143, %v141
    %v145 = vrsqrt.pop %v121
    %v146 = vmul.f32 %v121, %v145
    %vm147 = vcmp.eq.f32.partialorder %v121, inf
    %v148 = vsel %vm147, %v121, %v146
    %vm149 = vcmp.eq.f32.partialorder %v121, 0.0
    %v150 = vand.u32 %v121, 2147483648
    %v151 = vsel %vm149, %v150, %v148
    %v152 = vrsqrt.pop %v132
    %v153 = vmul.f32 %v132, %v152
    %vm154 = vcmp.eq.f32.partialorder %v132, inf
    %v155 = vsel %vm154, %v132, %v153
    %vm156 = vcmp.eq.f32.partialorder %v132, 0.0
    %v157 = vand.u32 %v132, 2147483648
    %v158 = vsel %vm156, %v157, %v155
    %v159 = vrsqrt.pop %v137
    %v160 = vmul.f32 %v137, %v159
    %vm161 = vcmp.eq.f32.partialorder %v137, inf
    %v162 = vsel %vm161, %v137, %v160
    %vm163 = vcmp.eq.f32.partialorder %v137, 0.0
    %v164 = vand.u32 %v137, 2147483648
    %v165 = vsel %vm163, %v164, %v162
    %v166 = vmul.f32 %v144, %v158
    %v167 = vmul.f32 %v151, %v165
    %v168 = vadd.f32 %v166, 1e-12
    %v169 = vadd.f32 %v167, 1e-12
    %v170 = vrcp.pop %v168
    %v171 = vmul.f32 %v100, %v170
    %v172 = vrcp.pop %v169
    %v173 = vmul.f32 %v105, %v172
    %v174 = vsub.f32 %v171, 1.0
    %v175 = vsub.f32 %v173, 1.0
    %v176 = vand.u32 2147483647, %v174
    %v177 = vand.u32 2147483647, %v175
    %v178 = vsel %vm78, %v176, 0.0
    %v179 = vsel %vm78, %v177, 0.0
    %v180 = vadd.f32 %v178, %v179
    %v181 = vld [vmem:[#allocation2] sm:$0x3]
    %v182 = vadd.f32 %v181, %v89
    %183 = vst [vmem:[#allocation2] sm:$0x3] %v182
    %v184 = vld [vmem:[#allocation3] sm:$0x3]
    %v185 = vadd.f32 %v184, %v180
    %186 = vst [vmem:[#allocation3] sm:$0x3] %v185
    // Predicated region
    $region22: #{tpu_custom_call.1} parent=1 // pred_check
      %p187 = pneg %p48
    $region23: #{tpu_custom_call.1} parent=1 // pred_check_branch
      %189 = sbr.rel (%p187) target = $region25
    $region24: #{tpu_custom_call.1} parent=1 // pred_region
      %v190 = vld [vmem:[#allocation2] sm:$0x3]
      %v191 = vsel %vm78, %v190, 0.0
      %192 = vadd.xlane.f32.xlu0 %v191
      %v193 = vpop.xlane.xlu0 %192
      %v194 = vrot.slane %v193, 4
      %v195 = vadd.f32 %v193, %v194
      %v196 = vrot.slane %v195, 2
      %v197 = vadd.f32 %v195, %v196
      %v198 = vrot.slane %v197, 1
      %v199 = vadd.f32 %v197, %v198
      %s200 = vtos %v199
      %v201 = vld [vmem:[#allocation3] sm:$0x3]
      %v202 = vsel %vm78, %v201, 0.0
      %203 = vadd.xlane.f32.xlu0 %v202
      %v204 = vpop.xlane.xlu0 %203
      %v205 = vrot.slane %v204, 4
      %v206 = vadd.f32 %v204, %v205
      %v207 = vrot.slane %v206, 2
      %v208 = vadd.f32 %v206, %v207
      %v209 = vrot.slane %v208, 1
      %v210 = vadd.f32 %v208, %v209
      %s211 = vtos %v210
      %s212 = smul.f32 %s200, 0.0006510417
      %s213 = smul.f32 %s211, 0.1
      %s214 = smul.f32 %s213, 0.001953125
      %s215 = sadd.f32 %s212, %s214
      %v216 = vstv %s215
      %vm217 = vcmask 0
      %218 = vst.msk [vmem:[#allocation9] sm:$0x1] %vm217, %v216
    $region25: #{tpu_custom_call.1} parent=1 // pred_fallthru
      _
    // Predicated region
    $region26: #{tpu_custom_call.1} parent=1 // pred_check
      _
    $region27: #{tpu_custom_call.1} parent=1 // pred_check_branch
      %220 = sbr.rel (0) target = $region29
    $region28: #{tpu_custom_call.1} parent=1 // pred_region
      %s222 = ssub.s32 16, 16
      %223 = vsyncadd [#allocation6], %s222
      %s225 = sshll.u32 [#allocation9], 4
      %s226 = int_to_ptr.vmem [resolvable:$true] %s225
      %228 = dma.vmem_to_hbm [thread:$0]  %s226, 16, %s2, [#allocation6]
    $region29: #{tpu_custom_call.1} parent=1 // pred_fallthru
      _
    // Predicated region
    $region30: #{tpu_custom_call.1} parent=1 // pred_check
      _
    $region31: #{tpu_custom_call.1} parent=1 // pred_check_branch
      %230 = sbr.rel (0) target = $region33
    $region32: #{tpu_custom_call.1} parent=1 // pred_region
      %231 = dma.done [#allocation6], 16
    $region33: #{tpu_custom_call.1} parent=1 // pred_fallthru
      _
    %232 = vsyncpa [#allocation5], 1
    %233 = vsyncpa [#allocation8], 1
    %234 = vsyncpa [#allocation6], 1

</llo_original>
